<compile_context>
chip_gen: v6e
topology: v6e:2x2x1
jax: 0.10.0
libtpu: 0.0.40
codegen_flags: <defaults>
</compile_context>

<pallas_src>
import jax
import jax.numpy as jnp
from jax import lax
from jax.experimental import pallas as pl
from jax.experimental.pallas import tpu as pltpu


_LANE = 128
_FAST_PATH_MAX_B = 4096                  # no-grid path cap (decoupled from tile_b)
_VMEM_TILE_BUDGET = 24 * 1024 * 1024     # conservative, fits v7x scoped default


def _round_up(x, m):
    return ((x + m - 1) // m) * m


def hyperpred_kernel(x_ref, w1_ref, b1_ref, w2t_ref, b2_ref, out_ref):
    """fc1 -> ReLU -> fc2 (transposed), fully fused on-chip.

    out_ref is (2, tile_b): row 0 = mean, row 1 = scale.  Lane-dense store
    instead of two (tile_b, 1) masked stores (single biggest store-path lever,
    especially on v5e with one vst slot)."""
    x = x_ref[...]
    h = jnp.dot(x, w1_ref[...], preferred_element_type=jnp.float32) + b1_ref[...]
    h = jnp.maximum(h, 0.0)
    # (out_dim, hidden) x (tile_b, hidden) contracted on hidden -> (out_dim, tile_b).
    # Keeps the tiny-N matmul result lane-dense and avoids transposing h.
    y_t = lax.dot_general(
        w2t_ref[...], h,
        dimension_numbers=(((1,), (1,)), ((), ())),
        preferred_element_type=jnp.float32,
    ) + b2_ref[...]
    out_ref[...] = y_t.astype(out_ref.dtype)


def hyperpred_forward(x, w1, b1, w2t, b2, *, tile_b=8192):
    """x: (B, in_dim).  Returns (mean, scale), each (B, 1), matching the torch
    module's `x.split(1, dim=1)` with out_dim == 2.

    If you have a bf16 producer upstream, pass x already in bf16 (do NOT cast
    here -- a wrapper-side cast is an extra full HBM pass); accumulation stays
    f32 via preferred_element_type inside the kernel."""
    B, in_dim = x.shape
    hidden = w1.shape[1]
    out_dim = w2t.shape[0]
    assert out_dim == 2, "HyperPred splits a 2-wide output into (mean, scale)"
    assert tile_b % _LANE == 0, "tile_b must be a multiple of 128 (lane-dense out)"

    w_bytes = (w1.size + b1.size + w2t.size + b2.size) * 4
    cost = pl.CostEstimate(
        flops=2 * B * (in_dim * hidden + hidden * out_dim),
        bytes_accessed=B * in_dim * x.dtype.itemsize + w_bytes + B * out_dim * 4,
        transcendentals=0,
    )

    if B <= min(tile_b, _FAST_PATH_MAX_B):
        # --- Small-batch fast path: single invocation, no grid, no pipeline.
        vmem = pl.BlockSpec(memory_space=pltpu.MemorySpace.VMEM)
        out_t = pl.pallas_call(
            hyperpred_kernel,
            out_shape=jax.ShapeDtypeStruct((out_dim, B), jnp.float32),
            in_specs=[vmem, vmem, vmem, vmem, vmem],
            out_specs=vmem,
            cost_estimate=cost,
        )(x, w1, b1, w2t, b2)
        return out_t[0].reshape(B, 1), out_t[1].reshape(B, 1)

    # --- Batched path: tile over B, weights resident in VMEM. ---
    # VMEM-aware tile cap: the (tile_b, in_dim) block pads to 128 lanes, so a
    # row costs round_up(in_dim,128)*4 B (double-buffered), plus the
    # (tile_b, hidden) intermediate and the double-buffered (2, tile_b) output.
    padded_in = _round_up(in_dim, _LANE)
    padded_hidden = _round_up(hidden, _LANE)
    per_row_bytes = 4 * (2 * padded_in + padded_hidden) + 2 * 8 * 4
    vmem_cap = max(_LANE, (_VMEM_TILE_BUDGET // per_row_bytes) // _LANE * _LANE)
    # Ensure >= 2 grid tiles so the "parallel" batch axis feeds both v7x TCs.
    two_tile_cap = max(_LANE, _round_up(pl.cdiv(B, 2), _LANE))
    tile = min(tile_b, vmem_cap, two_tile_cap)

    grid = (pl.cdiv(B, tile),)
    out_t = pl.pallas_call(
        hyperpred_kernel,
        out_shape=jax.ShapeDtypeStruct((out_dim, B), jnp.float32),
        grid=grid,
        in_specs=[
            pl.BlockSpec((tile, in_dim), lambda i: (i, 0)),      # streamed over B
            pl.BlockSpec((in_dim, hidden), lambda i: (0, 0)),    # resident
            pl.BlockSpec((1, hidden), lambda i: (0, 0)),         # resident
            pl.BlockSpec((out_dim, hidden), lambda i: (0, 0)),   # resident
            pl.BlockSpec((out_dim, 1), lambda i: (0, 0)),        # resident
        ],
        out_specs=pl.BlockSpec((out_dim, tile), lambda i: (0, i)),
        compiler_params=pltpu.CompilerParams(
            # Batch tiles are independent -> shard across TCs on v7x;
            # harmless on single-TC v5e/v6e.
            dimension_semantics=("parallel",),
            vmem_limit_bytes=32 * 1024 * 1024,
        ),
        cost_estimate=cost,
    )(x, w1, b1, w2t, b2)
    return out_t[0].reshape(B, 1), out_t[1].reshape(B, 1)


def init_params(key, in_dim, out_dim=2):
    """Deterministic synthetic init (PyTorch-Linear-like uniform bounds)."""
    hidden = in_dim // 2
    k1, k2, k3, k4 = jax.random.split(key, 4)
    lim1 = 1.0 / jnp.sqrt(in_dim)
    lim2 = 1.0 / jnp.sqrt(hidden)
    # w1 stored transposed (in_features, out_features); w2 kept torch-native
    # (out_features, in_features) because the kernel uses it transposed.
    w1 = jax.random.uniform(k1, (in_dim, hidden), jnp.float32, -lim1, lim1)
    b1 = jax.random.uniform(k2, (1, hidden), jnp.float32, -lim1, lim1)
    w2t = jax.random.uniform(k3, (out_dim, hidden), jnp.float32, -lim2, lim2)
    b2 = jax.random.uniform(k4, (out_dim, 1), jnp.float32, -lim2, lim2)
    return w1, b1, w2t, b2


def _reference(x, w1, b1, w2t, b2):
    h = jnp.maximum(x @ w1 + b1, 0.0)
    return h @ w2t.T + b2.T          # (B, out_dim)


if __name__ == "__main__":
    key = jax.random.PRNGKey(0)
    kx, kx2, kp = jax.random.split(key, 3)

    in_dim, out_dim = 32, 2
    w1, b1, w2t, b2 = init_params(kp, in_dim, out_dim)

    # --- Small-batch path (no grid) ---
    B_small = 8
    x_small = jax.random.normal(kx, (B_small, in_dim), dtype=jnp.float32)
    mean_s, scale_s = hyperpred_forward(x_small, w1, b1, w2t, b2)
    jax.block_until_ready((mean_s, scale_s))

    y_ref_s = _reference(x_small, w1, b1, w2t, b2)
    assert mean_s.shape == (B_small, 1) and scale_s.shape == (B_small, 1)
    assert jnp.allclose(mean_s[:, 0], y_ref_s[:, 0], atol=1e-5, rtol=1e-5)
    assert jnp.allclose(scale_s[:, 0], y_ref_s[:, 1], atol=1e-5, rtol=1e-5)

    # --- Batched path (B-tiled grid, resident weights, lane-dense output) ---
    B_big, tile_b = 1024, 256
    x_big = jax.random.normal(kx2, (B_big, in_dim), dtype=jnp.float32)
    mean_b, scale_b = hyperpred_forward(x_big, w1, b1, w2t, b2, tile_b=tile_b)
    jax.block_until_ready((mean_b, scale_b))

    y_ref_b = _reference(x_big, w1, b1, w2t, b2)
    assert mean_b.shape == (B_big, 1) and scale_b.shape == (B_big, 1)
    assert jnp.allclose(mean_b[:, 0], y_ref_b[:, 0], atol=1e-5, rtol=1e-5)
    assert jnp.allclose(scale_b[:, 0], y_ref_b[:, 1], atol=1e-5, rtol=1e-5)

    print("KERNEL_OK")
</pallas_src>

<mosaic_0001>
module attributes {stable_mosaic.version = 11 : i64} {
  func.func @hyperpred_kernel(%arg0: memref<8x32xf32, #tpu.memory_space<vmem>>, %arg1: memref<32x16xf32, #tpu.memory_space<vmem>>, %arg2: memref<1x16xf32, #tpu.memory_space<vmem>>, %arg3: memref<2x16xf32, #tpu.memory_space<vmem>>, %arg4: memref<2x1xf32, #tpu.memory_space<vmem>>, %arg5: memref<2x8xf32, #tpu.memory_space<vmem>>) attributes {dimension_semantics = [], scalar_prefetch = 0 : i64, scratch_operands = 0 : i64, tpu.core_type = #tpu.core_type<tc>} {
    %c0 = arith.constant 0 : index
    %c0_0 = arith.constant 0 : index
    %0 = vector.load %arg0[%c0, %c0_0] : memref<8x32xf32, #tpu.memory_space<vmem>>, vector<8x32xf32>
    %c0_1 = arith.constant 0 : index
    %c0_2 = arith.constant 0 : index
    %1 = vector.load %arg1[%c0_1, %c0_2] : memref<32x16xf32, #tpu.memory_space<vmem>>, vector<32x16xf32>
    %cst = arith.constant dense<0.000000e+00> : vector<8x16xf32>
    %2 = tpu.matmul %0, %1, %cst {dimension_numbers = #tpu.dot_dimension_numbers<[1], [0], [0], [1], [0, 0, 1, 1], [], []>} : vector<8x32xf32>, vector<32x16xf32>, vector<8x16xf32> -> vector<8x16xf32>
    %c0_3 = arith.constant 0 : index
    %c0_4 = arith.constant 0 : index
    %3 = vector.load %arg2[%c0_3, %c0_4] : memref<1x16xf32, #tpu.memory_space<vmem>>, vector<1x16xf32>
    %4 = vector.broadcast %3 : vector<1x16xf32> to vector<8x16xf32>
    %5 = arith.addf %2, %4 : vector<8x16xf32>
    %cst_5 = arith.constant 0.000000e+00 : f32
    %6 = vector.broadcast %cst_5 : f32 to vector<8x16xf32>
    %7 = arith.maximumf %5, %6 : vector<8x16xf32>
    %c0_6 = arith.constant 0 : index
    %c0_7 = arith.constant 0 : index
    %8 = vector.load %arg3[%c0_6, %c0_7] : memref<2x16xf32, #tpu.memory_space<vmem>>, vector<2x16xf32>
    %cst_8 = arith.constant dense<0.000000e+00> : vector<2x8xf32>
    %9 = tpu.matmul %8, %7, %cst_8 {dimension_numbers = #tpu.dot_dimension_numbers<[1], [1], [0], [0], [0, 0, 1, 0], [], []>} : vector<2x16xf32>, vector<8x16xf32>, vector<2x8xf32> -> vector<2x8xf32>
    %c0_9 = arith.constant 0 : index
    %c0_10 = arith.constant 0 : index
    %10 = vector.load %arg4[%c0_9, %c0_10] : memref<2x1xf32, #tpu.memory_space<vmem>>, vector<2x1xf32>
    %11 = vector.broadcast %10 : vector<2x1xf32> to vector<2x8xf32>
    %12 = arith.addf %9, %11 : vector<2x8xf32>
    %c0_11 = arith.constant 0 : index
    %c0_12 = arith.constant 0 : index
    %13 = vector.load %arg5[%c0_11, %c0_12] : memref<2x8xf32, #tpu.memory_space<vmem>>, vector<2x8xf32>
    tpu.vector_store %arg5[%c0_11, %c0_12], %12 {strides = array<i32>} : memref<2x8xf32, #tpu.memory_space<vmem>>, vector<2x8xf32>,
    return
  }
}

</mosaic_0001>

<llo_original>
// kernel: tpu_custom_call.1
$region0: #{tpu_custom_call.1}
  #allocation0 [shape = 'u32[]', space=smem, size = 0x4, offset = 0x4, fixed_abs, tag = 'smem constant byte address 0x4 - core index']
  #allocation1 [shape = 'u32[144,128]{1,0:T(1,128)}', space=vmem, size = 0x12000, scoped, tag = 'internal scratch']
  %s0 = inlined_call_operand.vmem [shape: f32[8,32], index: 0, kind: input, shape index: {}]
  %s1 = inlined_call_operand.vmem [shape: f32[32,16], index: 1, kind: input, shape index: {}]
  %s2 = inlined_call_operand.vmem [shape: f32[1,16], index: 2, kind: input, shape index: {}]
  %s3 = inlined_call_operand.vmem [shape: f32[2,16], index: 3, kind: input, shape index: {}]
  %s4 = inlined_call_operand.vmem [shape: f32[2,1], index: 4, kind: input, shape index: {}]
  %s5 = inlined_call_operand.hbm [shape: f32[2,8], index: 5, kind: output, shape index: {}]
  %s6 = sld [smem:[#allocation0]]
  $region30: #{tpu_custom_call.1} parent=0
    _
  %s8 = ssub.s32 1, %s6
  %s9 = scalar_select 0, %s8, %s6
  $region1: #{tpu_custom_call.1} parent=0
    #allocation2 [shape = 'u8[1024]{0}', space=vmem, size = 0x400, scoped, tag = 'output window, operand 0, single buffered']
    #allocation3 [shape = 's32[1]{0}', space=sflag, size = 0x4, scoped, tag = 'scoped memory for tpu_custom_call.1']
    %10 = vsyncpa [#allocation3], 0
    // Predicated region
    $region2: #{tpu_custom_call.1} parent=1 // pred_check
      _
    $region3: #{tpu_custom_call.1} parent=1 // pred_check_branch
      %12 = sbr.rel (0) target = $region5
    $region4: #{tpu_custom_call.1} parent=1 // pred_region
      _
    $region5: #{tpu_custom_call.1} parent=1 // pred_fallthru
      _
    // Predicated region
    $region6: #{tpu_custom_call.1} parent=1 // pred_check
      _
    $region7: #{tpu_custom_call.1} parent=1 // pred_check_branch
      %14 = sbr.rel (0) target = $region9
    $region8: #{tpu_custom_call.1} parent=1 // pred_region
      _
    $region9: #{tpu_custom_call.1} parent=1 // pred_fallthru
      _
    // Predicated region
    $region10: #{tpu_custom_call.1} parent=1 // pred_check
      _
    $region11: #{tpu_custom_call.1} parent=1 // pred_check_branch
      %16 = sbr.rel (0) target = $region13
    $region12: #{tpu_custom_call.1} parent=1 // pred_region
      _
    $region13: #{tpu_custom_call.1} parent=1 // pred_fallthru
      _
    // Predicated region
    $region14: #{tpu_custom_call.1} parent=1 // pred_check
      _
    $region15: #{tpu_custom_call.1} parent=1 // pred_check_branch
      %18 = sbr.rel (0) target = $region17
    $region16: #{tpu_custom_call.1} parent=1 // pred_region
      _
    $region17: #{tpu_custom_call.1} parent=1 // pred_fallthru
      _
    // Predicated region
    $region18: #{tpu_custom_call.1} parent=1 // pred_check
      _
    $region19: #{tpu_custom_call.1} parent=1 // pred_check_branch
      %20 = sbr.rel (0) target = $region21
    $region20: #{tpu_custom_call.1} parent=1 // pred_region
      _
    $region21: #{tpu_custom_call.1} parent=1 // pred_fallthru
      _
    %v21 = vld [vmem:[%s0] sm:$0xff]
    %v22 = vld [vmem:[%s1] sm:$0xff]
    %v23 = vld [vmem:[%s1 + $0x8] sm:$0xff]
    %v24 = vld [vmem:[%s1 + $0x10] sm:$0xff]
    %v25 = vld [vmem:[%s1 + $0x18] sm:$0xff]
    %v26 = vld [vmem:[%s2] sm:$0x1]
    %v28 = vlaneseq
    %v29 = vshrl.u32 %v28, 7
    %v30 = vsub.s32 0, %v29
    %v31 = vrot.slane %v26, %v30
    %vm33 = vcmask 261120
    %v35 = vsel %vm33, %v21, 0
    %37 = vmatprep.subr.mxu0 0.0
    %38 = vmatpush1.msra.mxu0 0.0
    %39 = vmatprep.subr.mxu0 0.0
    %40 = vmatpush1.msra.mxu0 0.0
    %41 = vmatprep.subr.mxu0 0.0
    %42 = vmatpush1.msra.mxu0 0.0
    %43 = vmatprep.subr.mxu0 0.0
    %44 = vmatpush1.msra.mxu0 0.0
    %45 = vmatprep.subr.mxu0 0.0
    %46 = vmatpush1.msra.mxu0 0.0
    %47 = vmatprep.subr.mxu0 0.0
    %48 = vmatpush1.msra.mxu0 0.0
    %49 = vmatprep.subr.mxu0 0.0
    %50 = vmatpush1.msra.mxu0 0.0
    %51 = vmatprep.subr.mxu0 0.0
    %52 = vmatpush1.msra.mxu0 0.0
    %53 = vmatprep.subr.mxu0 0.0
    %54 = vmatpush1.msra.mxu0 0.0
    %55 = vmatprep.subr.mxu0 0.0
    %56 = vmatpush1.msra.mxu0 0.0
    %57 = vmatprep.subr.mxu0 0.0
    %58 = vmatpush1.msra.mxu0 0.0
    %59 = vmatprep.subr.mxu0 0.0
    %60 = vmatpush1.msra.mxu0 0.0
    %61 = vmatprep.subr.mxu0 0.0
    %62 = vmatpush1.msra.mxu0 %v25
    %63 = vmatprep.subr.mxu0 0.0
    %64 = vmatpush1.msra.mxu0 %v24
    %65 = vmatprep.subr.mxu0 0.0
    %66 = vmatpush1.msra.mxu0 %v23
    %67 = vmatprep.subr.mxu0 0.0
    %68 = vmatpush1.msra.mxu0 %v22
    %69 = vmatprep.subr.mxu0 0.0
    %70 = vmatpush2.msra.mxu0 0.0
    %71 = vmatprep.subr.mxu0 0.0
    %72 = vmatpush2.msra.mxu0 0.0
    %73 = vmatprep.subr.mxu0 0.0
    %74 = vmatpush2.msra.mxu0 0.0
    %75 = vmatprep.subr.mxu0 0.0
    %76 = vmatpush2.msra.mxu0 0.0
    %77 = vmatprep.subr.mxu0 0.0
    %78 = vmatpush2.msra.mxu0 0.0
    %79 = vmatprep.subr.mxu0 0.0
    %80 = vmatpush2.msra.mxu0 0.0
    %81 = vmatprep.subr.mxu0 0.0
    %82 = vmatpush2.msra.mxu0 0.0
    %83 = vmatprep.subr.mxu0 0.0
    %84 = vmatpush2.msra.mxu0 0.0
    %85 = vmatprep.subr.mxu0 0.0
    %86 = vmatpush2.msra.mxu0 0.0
    %87 = vmatprep.subr.mxu0 0.0
    %88 = vmatpush2.msra.mxu0 0.0
    %89 = vmatprep.subr.mxu0 0.0
    %90 = vmatpush2.msra.mxu0 0.0
    %91 = vmatprep.subr.mxu0 0.0
    %92 = vmatpush2.msra.mxu0 0.0
    %93 = vmatprep.subr.mxu0 0.0
    %94 = vmatpush2.msra.mxu0 0.0
    %95 = vmatprep.subr.mxu0 0.0
    %96 = vmatpush2.msra.mxu0 0.0
    %97 = vmatprep.subr.mxu0 0.0
    %98 = vmatpush2.msra.mxu0 0.0
    %99 = vmatprep.subr.mxu0 0.0
    %100 = vmatpush2.msra.mxu0 0.0
    %101 = vmatprep.mubr.f32.mxu0 0.0
    %102 = vmatmul.mubr.f32.gmra.mxu0 %v35
    %v103 = vpop.f32.mrf.mxu0
    %v104 = vadd.f32 %v31, %v103
    %v105 = vpop.f32.mrf.mxu0
    %106 = vdwg.mxu0
    %v107 = vmax.f32 %v104, 0.0
    %v108 = vld [vmem:[%s3] sm:$0x3]
    %v109 = vld [vmem:[%s4] sm:$0x3]
    %111 = vset.pattern.permute.xlu0 0
    %112 = vperm.xlu0 %111, %v109
    %v113 = vpop.permute.xlu0 %112
    %vm115 = vcmask 130048
    %v117 = vsel %vm115, %v108, 0
    %v120 = vsel %vm115, %v107, 0
    %122 = vmatprep.subr.mxu0 0.0
    %123 = vmatpush1.xpose.msra.mxu0 0.0
    %124 = vmatprep.subr.mxu0 0.0
    %125 = vmatpush1.xpose.msra.mxu0 0.0
    %126 = vmatprep.subr.mxu0 0.0
    %127 = vmatpush1.xpose.msra.mxu0 0.0
    %128 = vmatprep.subr.mxu0 0.0
    %129 = vmatpush1.xpose.msra.mxu0 0.0
    %130 = vmatprep.subr.mxu0 0.0
    %131 = vmatpush1.xpose.msra.mxu0 0.0
    %132 = vmatprep.subr.mxu0 0.0
    %133 = vmatpush1.xpose.msra.mxu0 0.0
    %134 = vmatprep.subr.mxu0 0.0
    %135 = vmatpush1.xpose.msra.mxu0 0.0
    %136 = vmatprep.subr.mxu0 0.0
    %137 = vmatpush1.xpose.msra.mxu0 0.0
    %138 = vmatprep.subr.mxu0 0.0
    %139 = vmatpush1.xpose.msra.mxu0 0.0
    %140 = vmatprep.subr.mxu0 0.0
    %141 = vmatpush1.xpose.msra.mxu0 0.0
    %142 = vmatprep.subr.mxu0 0.0
    %143 = vmatpush1.xpose.msra.mxu0 0.0
    %144 = vmatprep.subr.mxu0 0.0
    %145 = vmatpush1.xpose.msra.mxu0 0.0
    %146 = vmatprep.subr.mxu0 0.0
    %147 = vmatpush1.xpose.msra.mxu0 0.0
    %148 = vmatprep.subr.mxu0 0.0
    %149 = vmatpush1.xpose.msra.mxu0 0.0
    %150 = vmatprep.subr.mxu0 0.0
    %151 = vmatpush1.xpose.msra.mxu0 0.0
    %152 = vmatprep.subr.mxu0 0.0
    %153 = vmatpush1.xpose.msra.mxu0 %v120
    %154 = vmatprep.subr.mxu0 0.0
    %155 = vmatpush2.xpose.msra.mxu0 0.0
    %156 = vmatprep.subr.mxu0 0.0
    %157 = vmatpush2.xpose.msra.mxu0 0.0
    %158 = vmatprep.subr.mxu0 0.0
    %159 = vmatpush2.xpose.msra.mxu0 0.0
    %160 = vmatprep.subr.mxu0 0.0
    %161 = vmatpush2.xpose.msra.mxu0 0.0
    %162 = vmatprep.subr.mxu0 0.0
    %163 = vmatpush2.xpose.msra.mxu0 0.0
    %164 = vmatprep.subr.mxu0 0.0
    %165 = vmatpush2.xpose.msra.mxu0 0.0
    %166 = vmatprep.subr.mxu0 0.0
    %167 = vmatpush2.xpose.msra.mxu0 0.0
    %168 = vmatprep.subr.mxu0 0.0
    %169 = vmatpush2.xpose.msra.mxu0 0.0
    %170 = vmatprep.subr.mxu0 0.0
    %171 = vmatpush2.xpose.msra.mxu0 0.0
    %172 = vmatprep.subr.mxu0 0.0
    %173 = vmatpush2.xpose.msra.mxu0 0.0
    %174 = vmatprep.subr.mxu0 0.0
    %175 = vmatpush2.xpose.msra.mxu0 0.0
    %176 = vmatprep.subr.mxu0 0.0
    %177 = vmatpush2.xpose.msra.mxu0 0.0
    %178 = vmatprep.subr.mxu0 0.0
    %179 = vmatpush2.xpose.msra.mxu0 0.0
    %180 = vmatprep.subr.mxu0 0.0
    %181 = vmatpush2.xpose.msra.mxu0 0.0
    %182 = vmatprep.subr.mxu0 0.0
    %183 = vmatpush2.xpose.msra.mxu0 0.0
    %184 = vmatprep.subr.mxu0 0.0
    %185 = vmatpush2.xpose.msra.mxu0 0.0
    %186 = vmatprep.mubr.f32.mxu0 0.0
    %187 = vmatmul.mubr.f32.gmra.mxu0 %v117
    %v188 = vpop.f32.mrf.mxu0
    %v189 = vadd.f32 %v113, %v188
    %v190 = vpop.f32.mrf.mxu0
    %191 = vdwg.mxu0
    %vm192 = vcmask 58368
    %193 = vst.msk [vmem:[#allocation2] sm:$0x3] %vm192, %v189
    // Predicated region
    $region22: #{tpu_custom_call.1} parent=1 // pred_check
      _
    $region23: #{tpu_custom_call.1} parent=1 // pred_check_branch
      %195 = sbr.rel (0) target = $region25
    $region24: #{tpu_custom_call.1} parent=1 // pred_region
      %s197 = ssub.s32 32, 32
      %198 = vsyncadd [#allocation3], %s197
      %s200 = sshll.u32 [#allocation2], 4
      %s201 = int_to_ptr.vmem [resolvable:$true] %s200
      %203 = dma.vmem_to_hbm [thread:$0]  %s201, 32, %s5, [#allocation3]
    $region25: #{tpu_custom_call.1} parent=1 // pred_fallthru
      _
    // Predicated region
    $region26: #{tpu_custom_call.1} parent=1 // pred_check
      _
    $region27: #{tpu_custom_call.1} parent=1 // pred_check_branch
      %205 = sbr.rel (0) target = $region29
    $region28: #{tpu_custom_call.1} parent=1 // pred_region
      %206 = dma.done [#allocation3], 32
    $region29: #{tpu_custom_call.1} parent=1 // pred_fallthru
      _
    %207 = vsyncpa [#allocation3], 1

</llo_original>
